<compile_context>
chip_gen: v7x
topology: tpu7x:2x2x1
jax: 0.10.0
libtpu: 0.0.40
codegen_flags: <defaults>
</compile_context>

<pallas_src>
import functools

import jax
import jax.numpy as jnp
from jax.experimental import pallas as pl
from jax.experimental.pallas import tpu as pltpu  # noqa: F401  (TPU backend namespace)


# ----------------------------- Pallas kernel ------------------------------- #
def _fused_gcn_kernel(*refs, num_layers):
    """refs = (a_ref, x_ref, w0, b0, w1, b1, ..., o_ref); all padded & VMEM-resident."""
    a_ref, x_ref = refs[0], refs[1]
    wb_refs = refs[2:2 + 2 * num_layers]
    o_ref = refs[2 + 2 * num_layers]

    a = a_ref[...]          # normalized adjacency, loaded once, reused by every layer
    h = x_ref[...]          # running node-feature matrix, stays on-chip across layers
    for layer in range(num_layers):
        w_ref = wb_refs[2 * layer]
        b = wb_refs[2 * layer + 1][...]
        c_in, c_out = w_ref.shape
        if c_in <= c_out:
            # Keep the smaller channel dim inside the N^2 product: (A @ H) @ W
            h = jnp.dot(
                jnp.dot(a, h, preferred_element_type=jnp.float32),
                w_ref[...],
                preferred_element_type=jnp.float32,
            )
        else:
            # A @ (H @ W)
            h = jnp.dot(
                a,
                jnp.dot(h, w_ref[...], preferred_element_type=jnp.float32),
                preferred_element_type=jnp.float32,
            )
        h = h + b  # bias broadcast over nodes
        if layer != num_layers - 1:
            h = jnp.maximum(h, 0.0)  # ReLU between layers (dropout = identity, eval)
    o_ref[...] = h.astype(o_ref.dtype)


def _round_up(x, m):
    return (x + m - 1) // m * m


def fused_gcn_forward(a_hat, x, params):
    """All GCN layers in one pallas_call.  Pads to lane-dense tiles, slices after."""
    n = x.shape[0]
    num_layers = len(params)
    c_in0 = params[0][0].shape[0]
    c_out_final = params[-1][0].shape[1]

    # Pad node dim and every channel dim to multiples of 128 (lane-dense, (8,128)
    # aligned).  Zero padding is exact: padded A_hat rows/cols are zero, padded W/b
    # rows/cols are zero, so the real (N x C_out) block of the result is unchanged.
    n_pad = _round_up(n, 128)
    a_p = jnp.zeros((n_pad, n_pad), jnp.float32).at[:n, :n].set(a_hat)
    x_p = jnp.zeros((n_pad, _round_up(c_in0, 128)), jnp.float32).at[:n, :c_in0].set(x)

    padded_wb = []
    for w, b in params:
        ci, co = w.shape
        ci_p, co_p = _round_up(ci, 128), _round_up(co, 128)
        w_p = jnp.zeros((ci_p, co_p), jnp.float32).at[:ci, :co].set(w)
        b_p = jnp.zeros((1, co_p), jnp.float32).at[:, :co].set(b)
        padded_wb += [w_p, b_p]

    c_out_pad = _round_up(c_out_final, 128)
    operands = [a_p, x_p] + padded_wb
    kernel = functools.partial(_fused_gcn_kernel, num_layers=num_layers)

    out_pad = pl.pallas_call(
        kernel,
        out_shape=jax.ShapeDtypeStruct((n_pad, c_out_pad), jnp.float32),
        in_specs=[pl.BlockSpec(op.shape, lambda: (0, 0)) for op in operands],
        out_specs=pl.BlockSpec((n_pad, c_out_pad), lambda: (0, 0)),
    )(*operands)
    return out_pad[:n, :c_out_final]


# ------------------------------ Plain-JAX glue ------------------------------ #
def build_normalized_adjacency(edge_index, num_nodes):
    """Dense GCN-normalized adjacency D^{-1/2}(A+I)D^{-1/2} from edge_index [2,E]."""
    row, col = edge_index[0], edge_index[1]  # source, target
    self_loops = jnp.arange(num_nodes, dtype=edge_index.dtype)
    row = jnp.concatenate([row, self_loops])
    col = jnp.concatenate([col, self_loops])
    ones = jnp.ones(row.shape[0], dtype=jnp.float32)
    deg = jnp.zeros((num_nodes,), jnp.float32).at[col].add(ones)
    deg_inv_sqrt = jnp.where(deg > 0, jax.lax.rsqrt(deg), 0.0)
    norm = deg_inv_sqrt[row] * deg_inv_sqrt[col]
    # message src -> dst aggregated at dst:  A_hat[dst, src] = norm
    a_hat = jnp.zeros((num_nodes, num_nodes), jnp.float32).at[col, row].add(norm)
    return a_hat


def init_params(key, in_channels, hidden_channels, out_channels, num_layers):
    """Deterministic glorot-uniform weights + zero biases for each GCNConv."""
    params = []
    for layer_ind in range(num_layers):
        c_in = in_channels if layer_ind == 0 else hidden_channels
        c_out = out_channels if layer_ind == num_layers - 1 else hidden_channels
        key, wk = jax.random.split(key)
        limit = (6.0 / (c_in + c_out)) ** 0.5
        w = jax.random.uniform(wk, (c_in, c_out), jnp.float32, -limit, limit)
        b = jnp.zeros((1, c_out), jnp.float32)
        params.append((w, b))
    return params


def very_simple_gcn_forward(x, edge_index, params):
    """Inference forward pass (dropout = identity, graph_level=False)."""
    # TODO(synk): training-mode dropout and graph-level scatter pooling not wired in
    # (module defaults graph_level=False; dropout is identity at eval time).
    a_hat = build_normalized_adjacency(edge_index, x.shape[0])
    return fused_gcn_forward(a_hat, x, params)


def _reference_forward(x, edge_index, params):
    """Pure-jnp reference for correctness checking."""
    a_hat = build_normalized_adjacency(edge_index, x.shape[0])
    h = x
    for layer_ind, (w, b) in enumerate(params):
        h = a_hat @ (h @ w) + b
        if layer_ind != len(params) - 1:
            h = jnp.maximum(h, 0.0)
    return h


# ---------------------------------- Main ------------------------------------ #
if __name__ == "__main__":
    key = jax.random.PRNGKey(0)

    num_nodes = 16
    in_channels = 8
    hidden_channels = 32
    out_channels = 4
    num_layers = 3

    k_x, k_e, k_p = jax.random.split(key, 3)

    # Node features [N, C_in]
    x = jax.random.normal(k_x, (num_nodes, in_channels), jnp.float32)

    # Small deterministic graph: ring edges + a few random edges, symmetrized.
    ring_src = jnp.arange(num_nodes, dtype=jnp.int32)
    ring_dst = (ring_src + 1) % num_nodes
    rnd_src = jax.random.randint(k_e, (8,), 0, num_nodes, dtype=jnp.int32)
    rnd_dst = jax.random.randint(jax.random.fold_in(k_e, 1), (8,), 0, num_nodes,
                                 dtype=jnp.int32)
    src = jnp.concatenate([ring_src, rnd_src])
    dst = jnp.concatenate([ring_dst, rnd_dst])
    edge_index = jnp.stack(
        [jnp.concatenate([src, dst]), jnp.concatenate([dst, src])], axis=0
    )  # [2, E], undirected

    params = init_params(k_p, in_channels, hidden_channels, out_channels, num_layers)

    out = very_simple_gcn_forward(x, edge_index, params)
    out = jax.block_until_ready(out)
    assert out.shape == (num_nodes, out_channels)

    ref = jax.block_until_ready(_reference_forward(x, edge_index, params))
    assert jnp.allclose(out, ref, rtol=1e-4, atol=1e-4), "Pallas output != reference"

    print("KERNEL_OK")
</pallas_src>

<mosaic_0001>
module attributes {stable_mosaic.version = 11 : i64} {
  func.func @_fused_gcn_kernel(%arg0: memref<128x128xf32, #tpu.memory_space<vmem>>, %arg1: memref<128x128xf32, #tpu.memory_space<vmem>>, %arg2: memref<128x128xf32, #tpu.memory_space<vmem>>, %arg3: memref<1x128xf32, #tpu.memory_space<vmem>>, %arg4: memref<128x128xf32, #tpu.memory_space<vmem>>, %arg5: memref<1x128xf32, #tpu.memory_space<vmem>>, %arg6: memref<128x128xf32, #tpu.memory_space<vmem>>, %arg7: memref<1x128xf32, #tpu.memory_space<vmem>>, %arg8: memref<128x128xf32, #tpu.memory_space<vmem>>) attributes {dimension_semantics = [], scalar_prefetch = 0 : i64, scratch_operands = 0 : i64, tpu.core_type = #tpu.core_type<tc>} {
    %c0 = arith.constant 0 : index
    %c0_0 = arith.constant 0 : index
    %0 = vector.load %arg0[%c0, %c0_0] : memref<128x128xf32, #tpu.memory_space<vmem>>, vector<128x128xf32>
    %c0_1 = arith.constant 0 : index
    %c0_2 = arith.constant 0 : index
    %1 = vector.load %arg1[%c0_1, %c0_2] : memref<128x128xf32, #tpu.memory_space<vmem>>, vector<128x128xf32>
    %c0_3 = arith.constant 0 : index
    %c0_4 = arith.constant 0 : index
    %2 = vector.load %arg3[%c0_3, %c0_4] : memref<1x128xf32, #tpu.memory_space<vmem>>, vector<1x128xf32>
    %cst = arith.constant dense<0.000000e+00> : vector<128x128xf32>
    %3 = tpu.matmul %0, %1, %cst {dimension_numbers = #tpu.dot_dimension_numbers<[1], [0], [0], [1], [0, 0, 1, 1], [], []>} : vector<128x128xf32>, vector<128x128xf32>, vector<128x128xf32> -> vector<128x128xf32>
    %c0_5 = arith.constant 0 : index
    %c0_6 = arith.constant 0 : index
    %4 = vector.load %arg2[%c0_5, %c0_6] : memref<128x128xf32, #tpu.memory_space<vmem>>, vector<128x128xf32>
    %cst_7 = arith.constant dense<0.000000e+00> : vector<128x128xf32>
    %5 = tpu.matmul %3, %4, %cst_7 {dimension_numbers = #tpu.dot_dimension_numbers<[1], [0], [0], [1], [0, 0, 1, 1], [], []>} : vector<128x128xf32>, vector<128x128xf32>, vector<128x128xf32> -> vector<128x128xf32>
    %6 = vector.broadcast %2 : vector<1x128xf32> to vector<128x128xf32>
    %7 = arith.addf %5, %6 : vector<128x128xf32>
    %cst_8 = arith.constant 0.000000e+00 : f32
    %8 = vector.broadcast %cst_8 : f32 to vector<128x128xf32>
    %9 = arith.maximumf %7, %8 : vector<128x128xf32>
    %c0_9 = arith.constant 0 : index
    %c0_10 = arith.constant 0 : index
    %10 = vector.load %arg5[%c0_9, %c0_10] : memref<1x128xf32, #tpu.memory_space<vmem>>, vector<1x128xf32>
    %cst_11 = arith.constant dense<0.000000e+00> : vector<128x128xf32>
    %11 = tpu.matmul %0, %9, %cst_11 {dimension_numbers = #tpu.dot_dimension_numbers<[1], [0], [0], [1], [0, 0, 1, 1], [], []>} : vector<128x128xf32>, vector<128x128xf32>, vector<128x128xf32> -> vector<128x128xf32>
    %c0_12 = arith.constant 0 : index
    %c0_13 = arith.constant 0 : index
    %12 = vector.load %arg4[%c0_12, %c0_13] : memref<128x128xf32, #tpu.memory_space<vmem>>, vector<128x128xf32>
    %cst_14 = arith.constant dense<0.000000e+00> : vector<128x128xf32>
    %13 = tpu.matmul %11, %12, %cst_14 {dimension_numbers = #tpu.dot_dimension_numbers<[1], [0], [0], [1], [0, 0, 1, 1], [], []>} : vector<128x128xf32>, vector<128x128xf32>, vector<128x128xf32> -> vector<128x128xf32>
    %14 = vector.broadcast %10 : vector<1x128xf32> to vector<128x128xf32>
    %15 = arith.addf %13, %14 : vector<128x128xf32>
    %cst_15 = arith.constant 0.000000e+00 : f32
    %16 = vector.broadcast %cst_15 : f32 to vector<128x128xf32>
    %17 = arith.maximumf %15, %16 : vector<128x128xf32>
    %c0_16 = arith.constant 0 : index
    %c0_17 = arith.constant 0 : index
    %18 = vector.load %arg7[%c0_16, %c0_17] : memref<1x128xf32, #tpu.memory_space<vmem>>, vector<1x128xf32>
    %cst_18 = arith.constant dense<0.000000e+00> : vector<128x128xf32>
    %19 = tpu.matmul %0, %17, %cst_18 {dimension_numbers = #tpu.dot_dimension_numbers<[1], [0], [0], [1], [0, 0, 1, 1], [], []>} : vector<128x128xf32>, vector<128x128xf32>, vector<128x128xf32> -> vector<128x128xf32>
    %c0_19 = arith.constant 0 : index
    %c0_20 = arith.constant 0 : index
    %20 = vector.load %arg6[%c0_19, %c0_20] : memref<128x128xf32, #tpu.memory_space<vmem>>, vector<128x128xf32>
    %cst_21 = arith.constant dense<0.000000e+00> : vector<128x128xf32>
    %21 = tpu.matmul %19, %20, %cst_21 {dimension_numbers = #tpu.dot_dimension_numbers<[1], [0], [0], [1], [0, 0, 1, 1], [], []>} : vector<128x128xf32>, vector<128x128xf32>, vector<128x128xf32> -> vector<128x128xf32>
    %22 = vector.broadcast %18 : vector<1x128xf32> to vector<128x128xf32>
    %23 = arith.addf %21, %22 : vector<128x128xf32>
    %c0_22 = arith.constant 0 : index
    %c0_23 = arith.constant 0 : index
    %24 = vector.load %arg8[%c0_22, %c0_23] : memref<128x128xf32, #tpu.memory_space<vmem>>, vector<128x128xf32>
    tpu.vector_store %arg8[%c0_22, %c0_23], %23 {strides = array<i32>} : memref<128x128xf32, #tpu.memory_space<vmem>>, vector<128x128xf32>,
    return
  }
}

</mosaic_0001>

<llo_original>
// kernel: tpu_custom_call.1
$region0: #{tpu_custom_call.1}
  #allocation0 [shape = 'u32[]', space=smem, size = 0x4, offset = 0x4, fixed_abs, tag = 'smem constant byte address 0x4 - core index']
  #allocation1 [shape = 'u32[144,128]{1,0:T(1,128)}', space=vmem, size = 0x12000, scoped, tag = 'internal scratch']
  %s0 = inlined_call_operand.hbm [shape: f32[128,128], index: 0, kind: input, shape index: {}]
  %s1 = inlined_call_operand.hbm [shape: f32[128,128], index: 1, kind: input, shape index: {}]
  %s2 = inlined_call_operand.hbm [shape: f32[128,128], index: 2, kind: input, shape index: {}]
  %s3 = inlined_call_operand.vmem [shape: f32[1,128], index: 3, kind: input, shape index: {}]
  %s4 = inlined_call_operand.hbm [shape: f32[128,128], index: 4, kind: input, shape index: {}]
  %s5 = inlined_call_operand.vmem [shape: f32[1,128], index: 5, kind: input, shape index: {}]
  %s6 = inlined_call_operand.hbm [shape: f32[128,128], index: 6, kind: input, shape index: {}]
  %s7 = inlined_call_operand.vmem [shape: f32[1,128], index: 7, kind: input, shape index: {}]
  %s8 = inlined_call_operand.hbm [shape: f32[128,128], index: 8, kind: output, shape index: {}]
  %s9 = sld [smem:[#allocation0]]
  $region62: #{tpu_custom_call.1} parent=0
    _
  %s11 = ssub.s32 1, %s9
  %s12 = scalar_select 0, %s11, %s9
  $region1: #{tpu_custom_call.1} parent=0
    #allocation2 [shape = 'u8[65536]{0}', space=vmem, size = 0x10000, scoped, tag = 'input window, operand 0, single buffered']
    #allocation3 [shape = 's32[1]{0}', space=sflag, size = 0x4, scoped, tag = 'scoped memory for tpu_custom_call.1']
    #allocation4 [shape = 's32[1]{0}', space=sflag, size = 0x4, scoped, tag = 'scoped memory for tpu_custom_call.1']
    #allocation5 [shape = 'u8[65536]{0}', space=vmem, size = 0x10000, scoped, tag = 'input window, operand 1, single buffered']
    #allocation6 [shape = 's32[1]{0}', space=sflag, size = 0x4, scoped, tag = 'scoped memory for tpu_custom_call.1']
    #allocation7 [shape = 'u8[65536]{0}', space=vmem, size = 0x10000, scoped, tag = 'input window, operand 2, single buffered']
    #allocation8 [shape = 'u8[65536]{0}', space=vmem, size = 0x10000, scoped, tag = 'input window, operand 4, single buffered']
    #allocation9 [shape = 's32[1]{0}', space=sflag, size = 0x4, scoped, tag = 'scoped memory for tpu_custom_call.1']
    #allocation10 [shape = 'u8[65536]{0}', space=vmem, size = 0x10000, scoped, tag = 'input window, operand 6, single buffered']
    #allocation11 [shape = 'u8[65536]{0}', space=vmem, size = 0x10000, scoped, tag = 'output window, operand 0, single buffered']
    %13 = vsyncpa [#allocation3], 0
    %14 = vsyncpa [#allocation6], 0
    %15 = vsyncpa [#allocation9], 0
    %16 = vsyncpa [#allocation4], 0
    // Predicated region
    $region2: #{tpu_custom_call.1} parent=1 // pred_check
      _
    $region3: #{tpu_custom_call.1} parent=1 // pred_check_branch
      %18 = sbr.rel (0) target = $region5
    $region4: #{tpu_custom_call.1} parent=1 // pred_region
      %s20 = ssub.s32 2048, 2048
      %21 = vsyncadd [#allocation3], %s20
      %s22 = sshll.u32 [#allocation2], 4
      %s23 = int_to_ptr.vmem [resolvable:$true] %s22
      %28 = dma.hbm_to_vmem [thread:$0]  %s0, 2048, %s23, [#allocation3], 128, 128, 8
    $region5: #{tpu_custom_call.1} parent=1 // pred_fallthru
      _
    // Predicated region
    $region6: #{tpu_custom_call.1} parent=1 // pred_check
      _
    $region7: #{tpu_custom_call.1} parent=1 // pred_check_branch
      %30 = sbr.rel (0) target = $region9
    $region8: #{tpu_custom_call.1} parent=1 // pred_region
      %s32 = ssub.s32 2048, 2048
      %33 = vsyncadd [#allocation6], %s32
      %s34 = sshll.u32 [#allocation5], 4
      %s35 = int_to_ptr.vmem [resolvable:$true] %s34
      %40 = dma.hbm_to_vmem [thread:$0]  %s1, 2048, %s35, [#allocation6], 128, 128, 8
    $region9: #{tpu_custom_call.1} parent=1 // pred_fallthru
      _
    // Predicated region
    $region10: #{tpu_custom_call.1} parent=1 // pred_check
      _
    $region11: #{tpu_custom_call.1} parent=1 // pred_check_branch
      %42 = sbr.rel (0) target = $region13
    $region12: #{tpu_custom_call.1} parent=1 // pred_region
      %s44 = ssub.s32 2048, 2048
      %45 = vsyncadd [#allocation6], %s44
      %s46 = sshll.u32 [#allocation7], 4
      %s47 = int_to_ptr.vmem [resolvable:$true] %s46
      %52 = dma.hbm_to_vmem [thread:$0]  %s2, 2048, %s47, [#allocation6], 128, 128, 8
    $region13: #{tpu_custom_call.1} parent=1 // pred_fallthru
      _
    // Predicated region
    $region14: #{tpu_custom_call.1} parent=1 // pred_check
      _
    $region15: #{tpu_custom_call.1} parent=1 // pred_check_branch
      %54 = sbr.rel (0) target = $region17
    $region16: #{tpu_custom_call.1} parent=1 // pred_region
      _
    $region17: #{tpu_custom_call.1} parent=1 // pred_fallthru
      _
    // Predicated region
    $region18: #{tpu_custom_call.1} parent=1 // pred_check
      _
    $region19: #{tpu_custom_call.1} parent=1 // pred_check_branch
      %56 = sbr.rel (0) target = $region21
    $region20: #{tpu_custom_call.1} parent=1 // pred_region
      %s58 = ssub.s32 2048, 2048
      %59 = vsyncadd [#allocation9], %s58
      %s60 = sshll.u32 [#allocation8], 4
      %s61 = int_to_ptr.vmem [resolvable:$true] %s60
      %66 = dma.hbm_to_vmem [thread:$0]  %s4, 2048, %s61, [#allocation9], 128, 128, 8
    $region21: #{tpu_custom_call.1} parent=1 // pred_fallthru
      _
    // Predicated region
    $region22: #{tpu_custom_call.1} parent=1 // pred_check
      _
    $region23: #{tpu_custom_call.1} parent=1 // pred_check_branch
      %68 = sbr.rel (0) target = $region25
    $region24: #{tpu_custom_call.1} parent=1 // pred_region
      _
    $region25: #{tpu_custom_call.1} parent=1 // pred_fallthru
      _
    // Predicated region
    $region26: #{tpu_custom_call.1} parent=1 // pred_check
      _
    $region27: #{tpu_custom_call.1} parent=1 // pred_check_branch
      %70 = sbr.rel (0) target = $region29
    $region28: #{tpu_custom_call.1} parent=1 // pred_region
      %s72 = ssub.s32 2048, 2048
      %73 = vsyncadd [#allocation9], %s72
      %s74 = sshll.u32 [#allocation10], 4
      %s75 = int_to_ptr.vmem [resolvable:$true] %s74
      %80 = dma.hbm_to_vmem [thread:$0]  %s6, 2048, %s75, [#allocation9], 128, 128, 8
    $region29: #{tpu_custom_call.1} parent=1 // pred_fallthru
      _
    // Predicated region
    $region30: #{tpu_custom_call.1} parent=1 // pred_check
      _
    $region31: #{tpu_custom_call.1} parent=1 // pred_check_branch
      %82 = sbr.rel (0) target = $region33
    $region32: #{tpu_custom_call.1} parent=1 // pred_region
      _
    $region33: #{tpu_custom_call.1} parent=1 // pred_fallthru
      _
    // Predicated region
    $region34: #{tpu_custom_call.1} parent=1 // pred_check
      _
    $region35: #{tpu_custom_call.1} parent=1 // pred_check_branch
      %84 = sbr.rel (0) target = $region37
    $region36: #{tpu_custom_call.1} parent=1 // pred_region
      %85 = dma.done [#allocation3], 2048
    $region37: #{tpu_custom_call.1} parent=1 // pred_fallthru
      _
    // Predicated region
    $region38: #{tpu_custom_call.1} parent=1 // pred_check
      _
    $region39: #{tpu_custom_call.1} parent=1 // pred_check_branch
      %87 = sbr.rel (0) target = $region41
    $region40: #{tpu_custom_call.1} parent=1 // pred_region
      %88 = dma.done [#allocation6], 2048
    $region41: #{tpu_custom_call.1} parent=1 // pred_fallthru
      _
    // Predicated region
    $region42: #{tpu_custom_call.1} parent=1 // pred_check
      _
    $region43: #{tpu_custom_call.1} parent=1 // pred_check_branch
      %90 = sbr.rel (0) target = $region45
    $region44: #{tpu_custom_call.1} parent=1 // pred_region
      %91 = dma.done [#allocation6], 2048
    $region45: #{tpu_custom_call.1} parent=1 // pred_fallthru
      _
    // Predicated region
    $region46: #{tpu_custom_call.1} parent=1 // pred_check
      _
    $region47: #{tpu_custom_call.1} parent=1 // pred_check_branch
      %93 = sbr.rel (0) target = $region49
    $region48: #{tpu_custom_call.1} parent=1 // pred_region
      %94 = dma.done [#allocation9], 2048
    $region49: #{tpu_custom_call.1} parent=1 // pred_fallthru
      _
    // Predicated region
    $region50: #{tpu_custom_call.1} parent=1 // pred_check
      _
    $region51: #{tpu_custom_call.1} parent=1 // pred_check_branch
      %96 = sbr.rel (0) target = $region53
    $region52: #{tpu_custom_call.1} parent=1 // pred_region
      %97 = dma.done [#allocation9], 2048
    $region53: #{tpu_custom_call.1} parent=1 // pred_fallthru
      _
    %v98 = vld [vmem:[#allocation2] sm:$0xff]
    %v99 = vld [vmem:[#allocation2 + $0x8] sm:$0xff]
    %v100 = vld [vmem:[#allocation2 + $0x10] sm:$0xff]
    %v101 = vld [vmem:[#allocation2 + $0x18] sm:$0xff]
    %v102 = vld [vmem:[#allocation2 + $0x20] sm:$0xff]
    %v103 = vld [vmem:[#allocation2 + $0x28] sm:$0xff]
    %v104 = vld [vmem:[#allocation2 + $0x30] sm:$0xff]
    %v105 = vld [vmem:[#allocation2 + $0x38] sm:$0xff]
    %v106 = vld [vmem:[#allocation2 + $0x40] sm:$0xff]
    %v107 = vld [vmem:[#allocation2 + $0x48] sm:$0xff]
    %v108 = vld [vmem:[#allocation2 + $0x50] sm:$0xff]
    %v109 = vld [vmem:[#allocation2 + $0x58] sm:$0xff]
    %v110 = vld [vmem:[#allocation2 + $0x60] sm:$0xff]
    %v111 = vld [vmem:[#allocation2 + $0x68] sm:$0xff]
    %v112 = vld [vmem:[#allocation2 + $0x70] sm:$0xff]
    %v113 = vld [vmem:[#allocation2 + $0x78] sm:$0xff]
    %v114 = vld [vmem:[#allocation5] sm:$0xff]
    %v115 = vld [vmem:[#allocation5 + $0x8] sm:$0xff]
    %v116 = vld [vmem:[#allocation5 + $0x10] sm:$0xff]
    %v117 = vld [vmem:[#allocation5 + $0x18] sm:$0xff]
    %v118 = vld [vmem:[#allocation5 + $0x20] sm:$0xff]
    %v119 = vld [vmem:[#allocation5 + $0x28] sm:$0xff]
    %v120 = vld [vmem:[#allocation5 + $0x30] sm:$0xff]
    %v121 = vld [vmem:[#allocation5 + $0x38] sm:$0xff]
    %v122 = vld [vmem:[#allocation5 + $0x40] sm:$0xff]
    %v123 = vld [vmem:[#allocation5 + $0x48] sm:$0xff]
    %v124 = vld [vmem:[#allocation5 + $0x50] sm:$0xff]
    %v125 = vld [vmem:[#allocation5 + $0x58] sm:$0xff]
    %v126 = vld [vmem:[#allocation5 + $0x60] sm:$0xff]
    %v127 = vld [vmem:[#allocation5 + $0x68] sm:$0xff]
    %v128 = vld [vmem:[#allocation5 + $0x70] sm:$0xff]
    %v129 = vld [vmem:[#allocation5 + $0x78] sm:$0xff]
    %v130 = vld [vmem:[%s3] sm:$0x1]
    %131 = vmatprep.subr.mxu0 0.0
    %132 = vmatpush1.msra.mxu0 %v114
    %133 = vmatprep.subr.mxu0 0.0
    %134 = vmatpush1.msra.mxu0 %v115
    %135 = vmatprep.subr.mxu0 0.0
    %136 = vmatpush1.msra.mxu0 %v116
    %137 = vmatprep.subr.mxu0 0.0
    %138 = vmatpush1.msra.mxu0 %v117
    %139 = vmatprep.subr.mxu0 0.0
    %140 = vmatpush1.msra.mxu0 %v118
    %141 = vmatprep.subr.mxu0 0.0
    %142 = vmatpush1.msra.mxu0 %v119
    %143 = vmatprep.subr.mxu0 0.0
    %144 = vmatpush1.msra.mxu0 %v120
    %145 = vmatprep.subr.mxu0 0.0
    %146 = vmatpush1.msra.mxu0 %v121
    %147 = vmatprep.subr.mxu0 0.0
    %148 = vmatpush1.msra.mxu0 %v122
    %149 = vmatprep.subr.mxu0 0.0
    %150 = vmatpush1.msra.mxu0 %v123
    %151 = vmatprep.subr.mxu0 0.0
    %152 = vmatpush1.msra.mxu0 %v124
    %153 = vmatprep.subr.mxu0 0.0
    %154 = vmatpush1.msra.mxu0 %v125
    %155 = vmatprep.subr.mxu0 0.0
    %156 = vmatpush1.msra.mxu0 %v126
    %157 = vmatprep.subr.mxu0 0.0
    %158 = vmatpush1.msra.mxu0 %v127
    %159 = vmatprep.subr.mxu0 0.0
    %160 = vmatpush1.msra.mxu0 %v128
    %161 = vmatprep.subr.mxu0 0.0
    %162 = vmatpush1.msra.mxu0 %v129
    %163 = vmatprep.subr.mxu0 0.0
    %164 = vmatpush1.msra.mxu0 0.0
    %165 = vmatprep.subr.mxu0 0.0
    %166 = vmatpush1.msra.mxu0 0.0
    %167 = vmatprep.subr.mxu0 0.0
    %168 = vmatpush1.msra.mxu0 0.0
    %169 = vmatprep.subr.mxu0 0.0
    %170 = vmatpush1.msra.mxu0 0.0
    %171 = vmatprep.subr.mxu0 0.0
    %172 = vmatpush1.msra.mxu0 0.0
    %173 = vmatprep.subr.mxu0 0.0
    %174 = vmatpush1.msra.mxu0 0.0
    %175 = vmatprep.subr.mxu0 0.0
    %176 = vmatpush1.msra.mxu0 0.0
    %177 = vmatprep.subr.mxu0 0.0
    %178 = vmatpush1.msra.mxu0 0.0
    %179 = vmatprep.subr.mxu0 0.0
    %180 = vmatpush1.msra.mxu0 0.0
    %181 = vmatprep.subr.mxu0 0.0
    %182 = vmatpush1.msra.mxu0 0.0
    %183 = vmatprep.subr.mxu0 0.0
    %184 = vmatpush1.msra.mxu0 0.0
    %185 = vmatprep.subr.mxu0 0.0
    %186 = vmatpush1.msra.mxu0 0.0
    %187 = vmatprep.subr.mxu0 0.0
    %188 = vmatpush1.msra.mxu0 0.0
    %189 = vmatprep.subr.mxu0 0.0
    %190 = vmatpush1.msra.mxu0 0.0
    %191 = vmatprep.subr.mxu0 0.0
    %192 = vmatpush1.msra.mxu0 0.0
    %193 = vmatprep.subr.mxu0 0.0
    %194 = vmatpush1.msra.mxu0 0.0
    %195 = vmatprep.mubr.f32.mxu0 0.0
    %196 = vmatmul.mubr.f32.gmra.mrb[0].mxu0 %v98
    %v197 = vpop.f32.mrb[0].mxu0
    %v198 = vadd.f32 0.0, %v197
    %v199 = vpop.f32.mrb[0].mxu0
    %200 = vmatprep.mubr.f32.mxu0 0.0
    %201 = vmatmul.mubr.f32.gmra.mrb[0].mxu0 %v99
    %v202 = vpop.f32.mrb[0].mxu0
    %v203 = vadd.f32 0.0, %v202
    %v204 = vpop.f32.mrb[0].mxu0
    %205 = vmatprep.mubr.f32.mxu0 0.0
    %206 = vmatmul.mubr.f32.gmra.mrb[0].mxu0 %v100
    %v207 = vpop.f32.mrb[0].mxu0
    %v208 = vadd.f32 0.0, %v207
    %v209 = vpop.f32.mrb[0].mxu0
    %210 = vmatprep.mubr.f32.mxu0 0.0
    %211 = vmatmul.mubr.f32.gmra.mrb[0].mxu0 %v101
    %v212 = vpop.f32.mrb[0].mxu0
    %v213 = vadd.f32 0.0, %v212
    %v214 = vpop.f32.mrb[0].mxu0
    %215 = vmatprep.mubr.f32.mxu0 0.0
    %216 = vmatmul.mubr.f32.gmra.mrb[0].mxu0 %v102
    %v217 = vpop.f32.mrb[0].mxu0
    %v218 = vadd.f32 0.0, %v217
    %v219 = vpop.f32.mrb[0].mxu0
    %220 = vmatprep.mubr.f32.mxu0 0.0
    %221 = vmatmul.mubr.f32.gmra.mrb[0].mxu0 %v103
    %v222 = vpop.f32.mrb[0].mxu0
    %v223 = vadd.f32 0.0, %v222
    %v224 = vpop.f32.mrb[0].mxu0
    %225 = vmatprep.mubr.f32.mxu0 0.0
    %226 = vmatmul.mubr.f32.gmra.mrb[0].mxu0 %v104
    %v227 = vpop.f32.mrb[0].mxu0
    %v228 = vadd.f32 0.0, %v227
    %v229 = vpop.f32.mrb[0].mxu0
    %230 = vmatprep.mubr.f32.mxu0 0.0
    %231 = vmatmul.mubr.f32.gmra.mrb[0].mxu0 %v105
    %v232 = vpop.f32.mrb[0].mxu0
    %v233 = vadd.f32 0.0, %v232
    %v234 = vpop.f32.mrb[0].mxu0
    %235 = vmatprep.mubr.f32.mxu0 0.0
    %236 = vmatmul.mubr.f32.gmra.mrb[0].mxu0 %v106
    %v237 = vpop.f32.mrb[0].mxu0
    %v238 = vadd.f32 0.0, %v237
    %v239 = vpop.f32.mrb[0].mxu0
    %240 = vmatprep.mubr.f32.mxu0 0.0
    %241 = vmatmul.mubr.f32.gmra.mrb[0].mxu0 %v107
    %v242 = vpop.f32.mrb[0].mxu0
    %v243 = vadd.f32 0.0, %v242
    %v244 = vpop.f32.mrb[0].mxu0
    %245 = vmatprep.mubr.f32.mxu0 0.0
    %246 = vmatmul.mubr.f32.gmra.mrb[0].mxu0 %v108
    %v247 = vpop.f32.mrb[0].mxu0
    %v248 = vadd.f32 0.0, %v247
    %v249 = vpop.f32.mrb[0].mxu0
    %250 = vmatprep.mubr.f32.mxu0 0.0
    %251 = vmatmul.mubr.f32.gmra.mrb[0].mxu0 %v109
    %v252 = vpop.f32.mrb[0].mxu0
    %v253 = vadd.f32 0.0, %v252
    %v254 = vpop.f32.mrb[0].mxu0
    %255 = vmatprep.mubr.f32.mxu0 0.0
    %256 = vmatmul.mubr.f32.gmra.mrb[0].mxu0 %v110
    %v257 = vpop.f32.mrb[0].mxu0
    %v258 = vadd.f32 0.0, %v257
    %v259 = vpop.f32.mrb[0].mxu0
    %260 = vmatprep.mubr.f32.mxu0 0.0
    %261 = vmatmul.mubr.f32.gmra.mrb[0].mxu0 %v111
    %v262 = vpop.f32.mrb[0].mxu0
    %v263 = vadd.f32 0.0, %v262
    %v264 = vpop.f32.mrb[0].mxu0
    %265 = vmatprep.mubr.f32.mxu0 0.0
    %266 = vmatmul.mubr.f32.gmra.mrb[0].mxu0 %v112
    %v267 = vpop.f32.mrb[0].mxu0
    %v268 = vadd.f32 0.0, %v267
    %v269 = vpop.f32.mrb[0].mxu0
    %270 = vmatprep.mubr.f32.mxu0 0.0
    %271 = vmatmul.mubr.f32.gmra.mrb[0].mxu0 %v113
    %v272 = vpop.f32.mrb[0].mxu0
    %v273 = vadd.f32 0.0, %v272
    %v274 = vpop.f32.mrb[0].mxu0
    %275 = vdwg.mxu0
    %v276 = vld [vmem:[#allocation7] sm:$0xff]
    %v277 = vld [vmem:[#allocation7 + $0x8] sm:$0xff]
    %v278 = vld [vmem:[#allocation7 + $0x10] sm:$0xff]
    %v279 = vld [vmem:[#allocation7 + $0x18] sm:$0xff]
    %v280 = vld [vmem:[#allocation7 + $0x20] sm:$0xff]
    %v281 = vld [vmem:[#allocation7 + $0x28] sm:$0xff]
    %v282 = vld [vmem:[#allocation7 + $0x30] sm:$0xff]
    %v283 = vld [vmem:[#allocation7 + $0x38] sm:$0xff]
    %v284 = vld [vmem:[#allocation7 + $0x40] sm:$0xff]
    %v285 = vld [vmem:[#allocation7 + $0x48] sm:$0xff]
    %v286 = vld [vmem:[#allocation7 + $0x50] sm:$0xff]
    %v287 = vld [vmem:[#allocation7 + $0x58] sm:$0xff]
    %v288 = vld [vmem:[#allocation7 + $0x60] sm:$0xff]
    %v289 = vld [vmem:[#allocation7 + $0x68] sm:$0xff]
    %v290 = vld [vmem:[#allocation7 + $0x70] sm:$0xff]
    %v291 = vld [vmem:[#allocation7 + $0x78] sm:$0xff]
    %v293 = vlaneseq
    %v294 = vshrl.u32 %v293, 7
    %v295 = vsub.s32 0, %v294
    %v296 = vrot.slane %v130, %v295
    %298 = vmatprep.subr.mxu0 0.0
    %299 = vmatpush1.msra.mxu0 %v276
    %300 = vmatprep.subr.mxu0 0.0
    %301 = vmatpush1.msra.mxu0 %v277
    %302 = vmatprep.subr.mxu0 0.0
    %303 = vmatpush1.msra.mxu0 %v278
    %304 = vmatprep.subr.mxu0 0.0
    %305 = vmatpush1.msra.mxu0 %v279
    %306 = vmatprep.subr.mxu0 0.0
    %307 = vmatpush1.msra.mxu0 %v280
    %308 = vmatprep.subr.mxu0 0.0
    %309 = vmatpush1.msra.mxu0 %v281
    %310 = vmatprep.subr.mxu0 0.0
    %311 = vmatpush1.msra.mxu0 %v282
    %312 = vmatprep.subr.mxu0 0.0
    %313 = vmatpush1.msra.mxu0 %v283
    %314 = vmatprep.subr.mxu0 0.0
    %315 = vmatpush1.msra.mxu0 %v284
    %316 = vmatprep.subr.mxu0 0.0
    %317 = vmatpush1.msra.mxu0 %v285
    %318 = vmatprep.subr.mxu0 0.0
    %319 = vmatpush1.msra.mxu0 %v286
    %320 = vmatprep.subr.mxu0 0.0
    %321 = vmatpush1.msra.mxu0 %v287
    %322 = vmatprep.subr.mxu0 0.0
    %323 = vmatpush1.msra.mxu0 %v288
    %324 = vmatprep.subr.mxu0 0.0
    %325 = vmatpush1.msra.mxu0 %v289
    %326 = vmatprep.subr.mxu0 0.0
    %327 = vmatpush1.msra.mxu0 %v290
    %328 = vmatprep.subr.mxu0 0.0
    %329 = vmatpush1.msra.mxu0 %v291
    %330 = vmatprep.subr.mxu0 0.0
    %331 = vmatpush1.msra.mxu0 0.0
    %332 = vmatprep.subr.mxu0 0.0
    %333 = vmatpush1.msra.mxu0 0.0
    %334 = vmatprep.subr.mxu0 0.0
    %335 = vmatpush1.msra.mxu0 0.0
    %336 = vmatprep.subr.mxu0 0.0
    %337 = vmatpush1.msra.mxu0 0.0
    %338 = vmatprep.subr.mxu0 0.0
    %339 = vmatpush1.msra.mxu0 0.0
    %340 = vmatprep.subr.mxu0 0.0
    %341 = vmatpush1.msra.mxu0 0.0
    %342 = vmatprep.subr.mxu0 0.0
    %343 = vmatpush1.msra.mxu0 0.0
    %344 = vmatprep.subr.mxu0 0.0
    %345 = vmatpush1.msra.mxu0 0.0
    %346 = vmatprep.subr.mxu0 0.0
    %347 = vmatpush1.msra.mxu0 0.0
    %348 = vmatprep.subr.mxu0 0.0
    %349 = vmatpush1.msra.mxu0 0.0
    %350 = vmatprep.subr.mxu0 0.0
    %351 = vmatpush1.msra.mxu0 0.0
    %352 = vmatprep.subr.mxu0 0.0
    %353 = vmatpush1.msra.mxu0 0.0
    %354 = vmatprep.subr.mxu0 0.0
    %355 = vmatpush1.msra.mxu0 0.0
    %356 = vmatprep.subr.mxu0 0.0
    %357 = vmatpush1.msra.mxu0 0.0
    %358 = vmatprep.subr.mxu0 0.0
    %359 = vmatpush1.msra.mxu0 0.0
    %360 = vmatprep.subr.mxu0 0.0
    %361 = vmatpush1.msra.mxu0 0.0
    %362 = vmatprep.mubr.f32.mxu0 0.0
    %363 = vmatmul.mubr.f32.gmra.mrb[0].mxu0 %v198
    %v364 = vpop.f32.mrb[0].mxu0
    %v365 = vadd.f32 %v296, %v364
    %v366 = vpop.f32.mrb[0].mxu0
    %367 = vmatprep.mubr.f32.mxu0 0.0
    %368 = vmatmul.mubr.f32.gmra.mrb[0].mxu0 %v203
    %v369 = vpop.f32.mrb[0].mxu0
    %v370 = vadd.f32 %v296, %v369
    %v371 = vpop.f32.mrb[0].mxu0
    %372 = vmatprep.mubr.f32.mxu0 0.0
    %373 = vmatmul.mubr.f32.gmra.mrb[0].mxu0 %v208
    %v374 = vpop.f32.mrb[0].mxu0
    %v375 = vadd.f32 %v296, %v374
    %v376 = vpop.f32.mrb[0].mxu0
    %377 = vmatprep.mubr.f32.mxu0 0.0
    %378 = vmatmul.mubr.f32.gmra.mrb[0].mxu0 %v213
    %v379 = vpop.f32.mrb[0].mxu0
    %v380 = vadd.f32 %v296, %v379
    %v381 = vpop.f32.mrb[0].mxu0
    %382 = vmatprep.mubr.f32.mxu0 0.0
    %383 = vmatmul.mubr.f32.gmra.mrb[0].mxu0 %v218
    %v384 = vpop.f32.mrb[0].mxu0
    %v385 = vadd.f32 %v296, %v384
    %v386 = vpop.f32.mrb[0].mxu0
    %387 = vmatprep.mubr.f32.mxu0 0.0
    %388 = vmatmul.mubr.f32.gmra.mrb[0].mxu0 %v223
    %v389 = vpop.f32.mrb[0].mxu0
    %v390 = vadd.f32 %v296, %v389
    %v391 = vpop.f32.mrb[0].mxu0
    %392 = vmatprep.mubr.f32.mxu0 0.0
    %393 = vmatmul.mubr.f32.gmra.mrb[0].mxu0 %v228
    %v394 = vpop.f32.mrb[0].mxu0
    %v395 = vadd.f32 %v296, %v394
    %v396 = vpop.f32.mrb[0].mxu0
    %397 = vmatprep.mubr.f32.mxu0 0.0
    %398 = vmatmul.mubr.f32.gmra.mrb[0].mxu0 %v233
    %v399 = vpop.f32.mrb[0].mxu0
    %v400 = vadd.f32 %v296, %v399
    %v401 = vpop.f32.mrb[0].mxu0
    %402 = vmatprep.mubr.f32.mxu0 0.0
    %403 = vmatmul.mubr.f32.gmra.mrb[0].mxu0 %v238
    %v404 = vpop.f32.mrb[0].mxu0
    %v405 = vadd.f32 %v296, %v404
    %v406 = vpop.f32.mrb[0].mxu0
    %407 = vmatprep.mubr.f32.mxu0 0.0
    %408 = vmatmul.mubr.f32.gmra.mrb[0].mxu0 %v243
    %v409 = vpop.f32.mrb[0].mxu0
    %v410 = vadd.f32 %v296, %v409
    %v411 = vpop.f32.mrb[0].mxu0
    %412 = vmatprep.mubr.f32.mxu0 0.0
    %413 = vmatmul.mubr.f32.gmra.mrb[0].mxu0 %v248
    %v414 = vpop.f32.mrb[0].mxu0
    %v415 = vadd.f32 %v296, %v414
    %v416 = vpop.f32.mrb[0].mxu0
    %417 = vmatprep.mubr.f32.mxu0 0.0
    %418 = vmatmul.mubr.f32.gmra.mrb[0].mxu0 %v253
    %v419 = vpop.f32.mrb[0].mxu0
    %v420 = vadd.f32 %v296, %v419
    %v421 = vpop.f32.mrb[0].mxu0
    %422 = vmatprep.mubr.f32.mxu0 0.0
    %423 = vmatmul.mubr.f32.gmra.mrb[0].mxu0 %v258
    %v424 = vpop.f32.mrb[0].mxu0
    %v425 = vadd.f32 %v296, %v424
    %v426 = vpop.f32.mrb[0].mxu0
    %427 = vmatprep.mubr.f32.mxu0 0.0
    %428 = vmatmul.mubr.f32.gmra.mrb[0].mxu0 %v263
    %v429 = vpop.f32.mrb[0].mxu0
    %v430 = vadd.f32 %v296, %v429
    %v431 = vpop.f32.mrb[0].mxu0
    %432 = vmatprep.mubr.f32.mxu0 0.0
    %433 = vmatmul.mubr.f32.gmra.mrb[0].mxu0 %v268
    %v434 = vpop.f32.mrb[0].mxu0
    %v435 = vadd.f32 %v296, %v434
    %v436 = vpop.f32.mrb[0].mxu0
    %437 = vmatprep.mubr.f32.mxu0 0.0
    %438 = vmatmul.mubr.f32.gmra.mrb[0].mxu0 %v273
    %v439 = vpop.f32.mrb[0].mxu0
    %v440 = vadd.f32 %v296, %v439
    %v441 = vpop.f32.mrb[0].mxu0
    %442 = vdwg.mxu0
    %v443 = vmax.f32 %v365, 0.0
    %v444 = vmax.f32 %v370, 0.0
    %v445 = vmax.f32 %v375, 0.0
    %v446 = vmax.f32 %v380, 0.0
    %v447 = vmax.f32 %v385, 0.0
    %v448 = vmax.f32 %v390, 0.0
    %v449 = vmax.f32 %v395, 0.0
    %v450 = vmax.f32 %v400, 0.0
    %v451 = vmax.f32 %v405, 0.0
    %v452 = vmax.f32 %v410, 0.0
    %v453 = vmax.f32 %v415, 0.0
    %v454 = vmax.f32 %v420, 0.0
    %v455 = vmax.f32 %v425, 0.0
    %v456 = vmax.f32 %v430, 0.0
    %v457 = vmax.f32 %v435, 0.0
    %v458 = vmax.f32 %v440, 0.0
    %v459 = vld [vmem:[%s5] sm:$0x1]
    %460 = vmatprep.subr.mxu0 0.0
    %461 = vmatpush1.msra.mxu0 %v443
    %462 = vmatprep.subr.mxu0 0.0
    %463 = vmatpush1.msra.mxu0 %v444
    %464 = vmatprep.subr.mxu0 0.0
    %465 = vmatpush1.msra.mxu0 %v445
    %466 = vmatprep.subr.mxu0 0.0
    %467 = vmatpush1.msra.mxu0 %v446
    %468 = vmatprep.subr.mxu0 0.0
    %469 = vmatpush1.msra.mxu0 %v447
    %470 = vmatprep.subr.mxu0 0.0
    %471 = vmatpush1.msra.mxu0 %v448
    %472 = vmatprep.subr.mxu0 0.0
    %473 = vmatpush1.msra.mxu0 %v449
    %474 = vmatprep.subr.mxu0 0.0
    %475 = vmatpush1.msra.mxu0 %v450
    %476 = vmatprep.subr.mxu0 0.0
    %477 = vmatpush1.msra.mxu0 %v451
    %478 = vmatprep.subr.mxu0 0.0
    %479 = vmatpush1.msra.mxu0 %v452
    %480 = vmatprep.subr.mxu0 0.0
    %481 = vmatpush1.msra.mxu0 %v453
    %482 = vmatprep.subr.mxu0 0.0
    %483 = vmatpush1.msra.mxu0 %v454
    %484 = vmatprep.subr.mxu0 0.0
    %485 = vmatpush1.msra.mxu0 %v455
    %486 = vmatprep.subr.mxu0 0.0
    %487 = vmatpush1.msra.mxu0 %v456
    %488 = vmatprep.subr.mxu0 0.0
    %489 = vmatpush1.msra.mxu0 %v457
    %490 = vmatprep.subr.mxu0 0.0
    %491 = vmatpush1.msra.mxu0 %v458
    %492 = vmatprep.subr.mxu0 0.0
    %493 = vmatpush1.msra.mxu0 0.0
    %494 = vmatprep.subr.mxu0 0.0
    %495 = vmatpush1.msra.mxu0 0.0
    %496 = vmatprep.subr.mxu0 0.0
    %497 = vmatpush1.msra.mxu0 0.0
    %498 = vmatprep.subr.mxu0 0.0
    %499 = vmatpush1.msra.mxu0 0.0
    %500 = vmatprep.subr.mxu0 0.0
    %501 = vmatpush1.msra.mxu0 0.0
    %502 = vmatprep.subr.mxu0 0.0
    %503 = vmatpush1.msra.mxu0 0.0
    %504 = vmatprep.subr.mxu0 0.0
    %505 = vmatpush1.msra.mxu0 0.0
    %506 = vmatprep.subr.mxu0 0.0
    %507 = vmatpush1.msra.mxu0 0.0
    %508 = vmatprep.subr.mxu0 0.0
    %509 = vmatpush1.msra.mxu0 0.0
    %510 = vmatprep.subr.mxu0 0.0
    %511 = vmatpush1.msra.mxu0 0.0
    %512 = vmatprep.subr.mxu0 0.0
    %513 = vmatpush1.msra.mxu0 0.0
    %514 = vmatprep.subr.mxu0 0.0
    %515 = vmatpush1.msra.mxu0 0.0
    %516 = vmatprep.subr.mxu0 0.0
    %517 = vmatpush1.msra.mxu0 0.0
    %518 = vmatprep.subr.mxu0 0.0
    %519 = vmatpush1.msra.mxu0 0.0
    %520 = vmatprep.subr.mxu0 0.0
    %521 = vmatpush1.msra.mxu0 0.0
    %522 = vmatprep.subr.mxu0 0.0
    %523 = vmatpush1.msra.mxu0 0.0
    %524 = vmatprep.mubr.f32.mxu0 0.0
    %525 = vmatmul.mubr.f32.gmra.mrb[0].mxu0 %v98
    %v526 = vpop.f32.mrb[0].mxu0
    %v527 = vadd.f32 0.0, %v526
    %v528 = vpop.f32.mrb[0].mxu0
    %529 = vmatprep.mubr.f32.mxu0 0.0
    %530 = vmatmul.mubr.f32.gmra.mrb[0].mxu0 %v99
    %v531 = vpop.f32.mrb[0].mxu0
    %v532 = vadd.f32 0.0, %v531
    %v533 = vpop.f32.mrb[0].mxu0
    %534 = vmatprep.mubr.f32.mxu0 0.0
    %535 = vmatmul.mubr.f32.gmra.mrb[0].mxu0 %v100
    %v536 = vpop.f32.mrb[0].mxu0
    %v537 = vadd.f32 0.0, %v536
    %v538 = vpop.f32.mrb[0].mxu0
    %539 = vmatprep.mubr.f32.mxu0 0.0
    %540 = vmatmul.mubr.f32.gmra.mrb[0].mxu0 %v101
    %v541 = vpop.f32.mrb[0].mxu0
    %v542 = vadd.f32 0.0, %v541
    %v543 = vpop.f32.mrb[0].mxu0
    %544 = vmatprep.mubr.f32.mxu0 0.0
    %545 = vmatmul.mubr.f32.gmra.mrb[0].mxu0 %v102
    %v546 = vpop.f32.mrb[0].mxu0
    %v547 = vadd.f32 0.0, %v546
    %v548 = vpop.f32.mrb[0].mxu0
    %549 = vmatprep.mubr.f32.mxu0 0.0
    %550 = vmatmul.mubr.f32.gmra.mrb[0].mxu0 %v103
    %v551 = vpop.f32.mrb[0].mxu0
    %v552 = vadd.f32 0.0, %v551
    %v553 = vpop.f32.mrb[0].mxu0
    %554 = vmatprep.mubr.f32.mxu0 0.0
    %555 = vmatmul.mubr.f32.gmra.mrb[0].mxu0 %v104
    %v556 = vpop.f32.mrb[0].mxu0
    %v557 = vadd.f32 0.0, %v556
    %v558 = vpop.f32.mrb[0].mxu0
    %559 = vmatprep.mubr.f32.mxu0 0.0
    %560 = vmatmul.mubr.f32.gmra.mrb[0].mxu0 %v105
    %v561 = vpop.f32.mrb[0].mxu0
    %v562 = vadd.f32 0.0, %v561
    %v563 = vpop.f32.mrb[0].mxu0
    %564 = vmatprep.mubr.f32.mxu0 0.0
    %565 = vmatmul.mubr.f32.gmra.mrb[0].mxu0 %v106
    %v566 = vpop.f32.mrb[0].mxu0
    %v567 = vadd.f32 0.0, %v566
    %v568 = vpop.f32.mrb[0].mxu0
    %569 = vmatprep.mubr.f32.mxu0 0.0
    %570 = vmatmul.mubr.f32.gmra.mrb[0].mxu0 %v107
    %v571 = vpop.f32.mrb[0].mxu0
    %v572 = vadd.f32 0.0, %v571
    %v573 = vpop.f32.mrb[0].mxu0
    %574 = vmatprep.mubr.f32.mxu0 0.0
    %575 = vmatmul.mubr.f32.gmra.mrb[0].mxu0 %v108
    %v576 = vpop.f32.mrb[0].mxu0
    %v577 = vadd.f32 0.0, %v576
    %v578 = vpop.f32.mrb[0].mxu0
    %579 = vmatprep.mubr.f32.mxu0 0.0
    %580 = vmatmul.mubr.f32.gmra.mrb[0].mxu0 %v109
    %v581 = vpop.f32.mrb[0].mxu0
    %v582 = vadd.f32 0.0, %v581
    %v583 = vpop.f32.mrb[0].mxu0
    %584 = vmatprep.mubr.f32.mxu0 0.0
    %585 = vmatmul.mubr.f32.gmra.mrb[0].mxu0 %v110
    %v586 = vpop.f32.mrb[0].mxu0
    %v587 = vadd.f32 0.0, %v586
    %v588 = vpop.f32.mrb[0].mxu0
    %589 = vmatprep.mubr.f32.mxu0 0.0
    %590 = vmatmul.mubr.f32.gmra.mrb[0].mxu0 %v111
    %v591 = vpop.f32.mrb[0].mxu0
    %v592 = vadd.f32 0.0, %v591
    %v593 = vpop.f32.mrb[0].mxu0
    %594 = vmatprep.mubr.f32.mxu0 0.0
    %595 = vmatmul.mubr.f32.gmra.mrb[0].mxu0 %v112
    %v596 = vpop.f32.mrb[0].mxu0
    %v597 = vadd.f32 0.0, %v596
    %v598 = vpop.f32.mrb[0].mxu0
    %599 = vmatprep.mubr.f32.mxu0 0.0
    %600 = vmatmul.mubr.f32.gmra.mrb[0].mxu0 %v113
    %v601 = vpop.f32.mrb[0].mxu0
    %v602 = vadd.f32 0.0, %v601
    %v603 = vpop.f32.mrb[0].mxu0
    %604 = vdwg.mxu0
    %v605 = vld [vmem:[#allocation8] sm:$0xff]
    %v606 = vld [vmem:[#allocation8 + $0x8] sm:$0xff]
    %v607 = vld [vmem:[#allocation8 + $0x10] sm:$0xff]
    %v608 = vld [vmem:[#allocation8 + $0x18] sm:$0xff]
    %v609 = vld [vmem:[#allocation8 + $0x20] sm:$0xff]
    %v610 = vld [vmem:[#allocation8 + $0x28] sm:$0xff]
    %v611 = vld [vmem:[#allocation8 + $0x30] sm:$0xff]
    %v612 = vld [vmem:[#allocation8 + $0x38] sm:$0xff]
    %v613 = vld [vmem:[#allocation8 + $0x40] sm:$0xff]
    %v614 = vld [vmem:[#allocation8 + $0x48] sm:$0xff]
    %v615 = vld [vmem:[#allocation8 + $0x50] sm:$0xff]
    %v616 = vld [vmem:[#allocation8 + $0x58] sm:$0xff]
    %v617 = vld [vmem:[#allocation8 + $0x60] sm:$0xff]
    %v618 = vld [vmem:[#allocation8 + $0x68] sm:$0xff]
    %v619 = vld [vmem:[#allocation8 + $0x70] sm:$0xff]
    %v620 = vld [vmem:[#allocation8 + $0x78] sm:$0xff]
    %v622 = vlaneseq
    %v623 = vshrl.u32 %v622, 7
    %v624 = vsub.s32 0, %v623
    %v625 = vrot.slane %v459, %v624
    %627 = vmatprep.subr.mxu0 0.0
    %628 = vmatpush1.msra.mxu0 %v605
    %629 = vmatprep.subr.mxu0 0.0
    %630 = vmatpush1.msra.mxu0 %v606
    %631 = vmatprep.subr.mxu0 0.0
    %632 = vmatpush1.msra.mxu0 %v607
    %633 = vmatprep.subr.mxu0 0.0
    %634 = vmatpush1.msra.mxu0 %v608
    %635 = vmatprep.subr.mxu0 0.0
    %636 = vmatpush1.msra.mxu0 %v609
    %637 = vmatprep.subr.mxu0 0.0
    %638 = vmatpush1.msra.mxu0 %v610
    %639 = vmatprep.subr.mxu0 0.0
    %640 = vmatpush1.msra.mxu0 %v611
    %641 = vmatprep.subr.mxu0 0.0
    %642 = vmatpush1.msra.mxu0 %v612
    %643 = vmatprep.subr.mxu0 0.0
    %644 = vmatpush1.msra.mxu0 %v613
    %645 = vmatprep.subr.mxu0 0.0
    %646 = vmatpush1.msra.mxu0 %v614
    %647 = vmatprep.subr.mxu0 0.0
    %648 = vmatpush1.msra.mxu0 %v615
    %649 = vmatprep.subr.mxu0 0.0
    %650 = vmatpush1.msra.mxu0 %v616
    %651 = vmatprep.subr.mxu0 0.0
    %652 = vmatpush1.msra.mxu0 %v617
    %653 = vmatprep.subr.mxu0 0.0
    %654 = vmatpush1.msra.mxu0 %v618
    %655 = vmatprep.subr.mxu0 0.0
    %656 = vmatpush1.msra.mxu0 %v619
    %657 = vmatprep.subr.mxu0 0.0
    %658 = vmatpush1.msra.mxu0 %v620
    %659 = vmatprep.subr.mxu0 0.0
    %660 = vmatpush1.msra.mxu0 0.0
    %661 = vmatprep.subr.mxu0 0.0
    %662 = vmatpush1.msra.mxu0 0.0
    %663 = vmatprep.subr.mxu0 0.0
    %664 = vmatpush1.msra.mxu0 0.0
    %665 = vmatprep.subr.mxu0 0.0
    %666 = vmatpush1.msra.mxu0 0.0
    %667 = vmatprep.subr.mxu0 0.0
    %668 = vmatpush1.msra.mxu0 0.0
    %669 = vmatprep.subr.mxu0 0.0
    %670 = vmatpush1.msra.mxu0 0.0
    %671 = vmatprep.subr.mxu0 0.0
    %672 = vmatpush1.msra.mxu0 0.0
    %673 = vmatprep.subr.mxu0 0.0
    %674 = vmatpush1.msra.mxu0 0.0
    %675 = vmatprep.subr.mxu0 0.0
    %676 = vmatpush1.msra.mxu0 0.0
    %677 = vmatprep.subr.mxu0 0.0
    %678 = vmatpush1.msra.mxu0 0.0
    %679 = vmatprep.subr.mxu0 0.0
    %680 = vmatpush1.msra.mxu0 0.0
    %681 = vmatprep.subr.mxu0 0.0
    %682 = vmatpush1.msra.mxu0 0.0
    %683 = vmatprep.subr.mxu0 0.0
    %684 = vmatpush1.msra.mxu0 0.0
    %685 = vmatprep.subr.mxu0 0.0
    %686 = vmatpush1.msra.mxu0 0.0
    %687 = vmatprep.subr.mxu0 0.0
    %688 = vmatpush1.msra.mxu0 0.0
    %689 = vmatprep.subr.mxu0 0.0
    %690 = vmatpush1.msra.mxu0 0.0
    %691 = vmatprep.mubr.f32.mxu0 0.0
    %692 = vmatmul.mubr.f32.gmra.mrb[0].mxu0 %v527
    %v693 = vpop.f32.mrb[0].mxu0
    %v694 = vadd.f32 %v625, %v693
    %v695 = vpop.f32.mrb[0].mxu0
    %696 = vmatprep.mubr.f32.mxu0 0.0
    %697 = vmatmul.mubr.f32.gmra.mrb[0].mxu0 %v532
    %v698 = vpop.f32.mrb[0].mxu0
    %v699 = vadd.f32 %v625, %v698
    %v700 = vpop.f32.mrb[0].mxu0
    %701 = vmatprep.mubr.f32.mxu0 0.0
    %702 = vmatmul.mubr.f32.gmra.mrb[0].mxu0 %v537
    %v703 = vpop.f32.mrb[0].mxu0
    %v704 = vadd.f32 %v625, %v703
    %v705 = vpop.f32.mrb[0].mxu0
    %706 = vmatprep.mubr.f32.mxu0 0.0
    %707 = vmatmul.mubr.f32.gmra.mrb[0].mxu0 %v542
    %v708 = vpop.f32.mrb[0].mxu0
    %v709 = vadd.f32 %v625, %v708
    %v710 = vpop.f32.mrb[0].mxu0
    %711 = vmatprep.mubr.f32.mxu0 0.0
    %712 = vmatmul.mubr.f32.gmra.mrb[0].mxu0 %v547
    %v713 = vpop.f32.mrb[0].mxu0
    %v714 = vadd.f32 %v625, %v713
    %v715 = vpop.f32.mrb[0].mxu0
    %716 = vmatprep.mubr.f32.mxu0 0.0
    %717 = vmatmul.mubr.f32.gmra.mrb[0].mxu0 %v552
    %v718 = vpop.f32.mrb[0].mxu0
    %v719 = vadd.f32 %v625, %v718
    %v720 = vpop.f32.mrb[0].mxu0
    %721 = vmatprep.mubr.f32.mxu0 0.0
    %722 = vmatmul.mubr.f32.gmra.mrb[0].mxu0 %v557
    %v723 = vpop.f32.mrb[0].mxu0
    %v724 = vadd.f32 %v625, %v723
    %v725 = vpop.f32.mrb[0].mxu0
    %726 = vmatprep.mubr.f32.mxu0 0.0
    %727 = vmatmul.mubr.f32.gmra.mrb[0].mxu0 %v562
    %v728 = vpop.f32.mrb[0].mxu0
    %v729 = vadd.f32 %v625, %v728
    %v730 = vpop.f32.mrb[0].mxu0
    %731 = vmatprep.mubr.f32.mxu0 0.0
    %732 = vmatmul.mubr.f32.gmra.mrb[0].mxu0 %v567
    %v733 = vpop.f32.mrb[0].mxu0
    %v734 = vadd.f32 %v625, %v733
    %v735 = vpop.f32.mrb[0].mxu0
    %736 = vmatprep.mubr.f32.mxu0 0.0
    %737 = vmatmul.mubr.f32.gmra.mrb[0].mxu0 %v572
    %v738 = vpop.f32.mrb[0].mxu0
    %v739 = vadd.f32 %v625, %v738
    %v740 = vpop.f32.mrb[0].mxu0
    %741 = vmatprep.mubr.f32.mxu0 0.0
    %742 = vmatmul.mubr.f32.gmra.mrb[0].mxu0 %v577
    %v743 = vpop.f32.mrb[0].mxu0
    %v744 = vadd.f32 %v625, %v743
    %v745 = vpop.f32.mrb[0].mxu0
    %746 = vmatprep.mubr.f32.mxu0 0.0
    %747 = vmatmul.mubr.f32.gmra.mrb[0].mxu0 %v582
    %v748 = vpop.f32.mrb[0].mxu0
    %v749 = vadd.f32 %v625, %v748
    %v750 = vpop.f32.mrb[0].mxu0
    %751 = vmatprep.mubr.f32.mxu0 0.0
    %752 = vmatmul.mubr.f32.gmra.mrb[0].mxu0 %v587
    %v753 = vpop.f32.mrb[0].mxu0
    %v754 = vadd.f32 %v625, %v753
    %v755 = vpop.f32.mrb[0].mxu0
    %756 = vmatprep.mubr.f32.mxu0 0.0
    %757 = vmatmul.mubr.f32.gmra.mrb[0].mxu0 %v592
    %v758 = vpop.f32.mrb[0].mxu0
    %v759 = vadd.f32 %v625, %v758
    %v760 = vpop.f32.mrb[0].mxu0
    %761 = vmatprep.mubr.f32.mxu0 0.0
    %762 = vmatmul.mubr.f32.gmra.mrb[0].mxu0 %v597
    %v763 = vpop.f32.mrb[0].mxu0
    %v764 = vadd.f32 %v625, %v763
    %v765 = vpop.f32.mrb[0].mxu0
    %766 = vmatprep.mubr.f32.mxu0 0.0
    %767 = vmatmul.mubr.f32.gmra.mrb[0].mxu0 %v602
    %v768 = vpop.f32.mrb[0].mxu0
    %v769 = vadd.f32 %v625, %v768
    %v770 = vpop.f32.mrb[0].mxu0
    %771 = vdwg.mxu0
    %v772 = vmax.f32 %v694, 0.0
    %v773 = vmax.f32 %v699, 0.0
    %v774 = vmax.f32 %v704, 0.0
    %v775 = vmax.f32 %v709, 0.0
    %v776 = vmax.f32 %v714, 0.0
    %v777 = vmax.f32 %v719, 0.0
    %v778 = vmax.f32 %v724, 0.0
    %v779 = vmax.f32 %v729, 0.0
    %v780 = vmax.f32 %v734, 0.0
    %v781 = vmax.f32 %v739, 0.0
    %v782 = vmax.f32 %v744, 0.0
    %v783 = vmax.f32 %v749, 0.0
    %v784 = vmax.f32 %v754, 0.0
    %v785 = vmax.f32 %v759, 0.0
    %v786 = vmax.f32 %v764, 0.0
    %v787 = vmax.f32 %v769, 0.0
    %v788 = vld [vmem:[%s7] sm:$0x1]
    %789 = vmatprep.subr.mxu0 0.0
    %790 = vmatpush1.msra.mxu0 %v772
    %791 = vmatprep.subr.mxu0 0.0
    %792 = vmatpush1.msra.mxu0 %v773
    %793 = vmatprep.subr.mxu0 0.0
    %794 = vmatpush1.msra.mxu0 %v774
    %795 = vmatprep.subr.mxu0 0.0
    %796 = vmatpush1.msra.mxu0 %v775
    %797 = vmatprep.subr.mxu0 0.0
    %798 = vmatpush1.msra.mxu0 %v776
    %799 = vmatprep.subr.mxu0 0.0
    %800 = vmatpush1.msra.mxu0 %v777
    %801 = vmatprep.subr.mxu0 0.0
    %802 = vmatpush1.msra.mxu0 %v778
    %803 = vmatprep.subr.mxu0 0.0
    %804 = vmatpush1.msra.mxu0 %v779
    %805 = vmatprep.subr.mxu0 0.0
    %806 = vmatpush1.msra.mxu0 %v780
    %807 = vmatprep.subr.mxu0 0.0
    %808 = vmatpush1.msra.mxu0 %v781
    %809 = vmatprep.subr.mxu0 0.0
    %810 = vmatpush1.msra.mxu0 %v782
    %811 = vmatprep.subr.mxu0 0.0
    %812 = vmatpush1.msra.mxu0 %v783
    %813 = vmatprep.subr.mxu0 0.0
    %814 = vmatpush1.msra.mxu0 %v784
    %815 = vmatprep.subr.mxu0 0.0
    %816 = vmatpush1.msra.mxu0 %v785
    %817 = vmatprep.subr.mxu0 0.0
    %818 = vmatpush1.msra.mxu0 %v786
    %819 = vmatprep.subr.mxu0 0.0
    %820 = vmatpush1.msra.mxu0 %v787
    %821 = vmatprep.subr.mxu0 0.0
    %822 = vmatpush1.msra.mxu0 0.0
    %823 = vmatprep.subr.mxu0 0.0
    %824 = vmatpush1.msra.mxu0 0.0
    %825 = vmatprep.subr.mxu0 0.0
    %826 = vmatpush1.msra.mxu0 0.0
    %827 = vmatprep.subr.mxu0 0.0
    %828 = vmatpush1.msra.mxu0 0.0
    %829 = vmatprep.subr.mxu0 0.0
    %830 = vmatpush1.msra.mxu0 0.0
    %831 = vmatprep.subr.mxu0 0.0
    %832 = vmatpush1.msra.mxu0 0.0
    %833 = vmatprep.subr.mxu0 0.0
    %834 = vmatpush1.msra.mxu0 0.0
    %835 = vmatprep.subr.mxu0 0.0
    %836 = vmatpush1.msra.mxu0 0.0
    %837 = vmatprep.subr.mxu0 0.0
    %838 = vmatpush1.msra.mxu0 0.0
    %839 = vmatprep.subr.mxu0 0.0
    %840 = vmatpush1.msra.mxu0 0.0
    %841 = vmatprep.subr.mxu0 0.0
    %842 = vmatpush1.msra.mxu0 0.0
    %843 = vmatprep.subr.mxu0 0.0
    %844 = vmatpush1.msra.mxu0 0.0
    %845 = vmatprep.subr.mxu0 0.0
    %846 = vmatpush1.msra.mxu0 0.0
    %847 = vmatprep.subr.mxu0 0.0
    %848 = vmatpush1.msra.mxu0 0.0
    %849 = vmatprep.subr.mxu0 0.0
    %850 = vmatpush1.msra.mxu0 0.0
    %851 = vmatprep.subr.mxu0 0.0
    %852 = vmatpush1.msra.mxu0 0.0
    %853 = vmatprep.mubr.f32.mxu0 0.0
    %854 = vmatmul.mubr.f32.gmra.mrb[0].mxu0 %v98
    %v855 = vpop.f32.mrb[0].mxu0
    %v856 = vadd.f32 0.0, %v855
    %v857 = vpop.f32.mrb[0].mxu0
    %858 = vmatprep.mubr.f32.mxu0 0.0
    %859 = vmatmul.mubr.f32.gmra.mrb[0].mxu0 %v99
    %v860 = vpop.f32.mrb[0].mxu0
    %v861 = vadd.f32 0.0, %v860
    %v862 = vpop.f32.mrb[0].mxu0
    %863 = vmatprep.mubr.f32.mxu0 0.0
    %864 = vmatmul.mubr.f32.gmra.mrb[0].mxu0 %v100
    %v865 = vpop.f32.mrb[0].mxu0
    %v866 = vadd.f32 0.0, %v865
    %v867 = vpop.f32.mrb[0].mxu0
    %868 = vmatprep.mubr.f32.mxu0 0.0
    %869 = vmatmul.mubr.f32.gmra.mrb[0].mxu0 %v101
    %v870 = vpop.f32.mrb[0].mxu0
    %v871 = vadd.f32 0.0, %v870
    %v872 = vpop.f32.mrb[0].mxu0
    %873 = vmatprep.mubr.f32.mxu0 0.0
    %874 = vmatmul.mubr.f32.gmra.mrb[0].mxu0 %v102
    %v875 = vpop.f32.mrb[0].mxu0
    %v876 = vadd.f32 0.0, %v875
    %v877 = vpop.f32.mrb[0].mxu0
    %878 = vmatprep.mubr.f32.mxu0 0.0
    %879 = vmatmul.mubr.f32.gmra.mrb[0].mxu0 %v103
    %v880 = vpop.f32.mrb[0].mxu0
    %v881 = vadd.f32 0.0, %v880
    %v882 = vpop.f32.mrb[0].mxu0
    %883 = vmatprep.mubr.f32.mxu0 0.0
    %884 = vmatmul.mubr.f32.gmra.mrb[0].mxu0 %v104
    %v885 = vpop.f32.mrb[0].mxu0
    %v886 = vadd.f32 0.0, %v885
    %v887 = vpop.f32.mrb[0].mxu0
    %888 = vmatprep.mubr.f32.mxu0 0.0
    %889 = vmatmul.mubr.f32.gmra.mrb[0].mxu0 %v105
    %v890 = vpop.f32.mrb[0].mxu0
    %v891 = vadd.f32 0.0, %v890
    %v892 = vpop.f32.mrb[0].mxu0
    %893 = vmatprep.mubr.f32.mxu0 0.0
    %894 = vmatmul.mubr.f32.gmra.mrb[0].mxu0 %v106
    %v895 = vpop.f32.mrb[0].mxu0
    %v896 = vadd.f32 0.0, %v895
    %v897 = vpop.f32.mrb[0].mxu0
    %898 = vmatprep.mubr.f32.mxu0 0.0
    %899 = vmatmul.mubr.f32.gmra.mrb[0].mxu0 %v107
    %v900 = vpop.f32.mrb[0].mxu0
    %v901 = vadd.f32 0.0, %v900
    %v902 = vpop.f32.mrb[0].mxu0
    %903 = vmatprep.mubr.f32.mxu0 0.0
    %904 = vmatmul.mubr.f32.gmra.mrb[0].mxu0 %v108
    %v905 = vpop.f32.mrb[0].mxu0
    %v906 = vadd.f32 0.0, %v905
    %v907 = vpop.f32.mrb[0].mxu0
    %908 = vmatprep.mubr.f32.mxu0 0.0
    %909 = vmatmul.mubr.f32.gmra.mrb[0].mxu0 %v109
    %v910 = vpop.f32.mrb[0].mxu0
    %v911 = vadd.f32 0.0, %v910
    %v912 = vpop.f32.mrb[0].mxu0
    %913 = vmatprep.mubr.f32.mxu0 0.0
    %914 = vmatmul.mubr.f32.gmra.mrb[0].mxu0 %v110
    %v915 = vpop.f32.mrb[0].mxu0
    %v916 = vadd.f32 0.0, %v915
    %v917 = vpop.f32.mrb[0].mxu0
    %918 = vmatprep.mubr.f32.mxu0 0.0
    %919 = vmatmul.mubr.f32.gmra.mrb[0].mxu0 %v111
    %v920 = vpop.f32.mrb[0].mxu0
    %v921 = vadd.f32 0.0, %v920
    %v922 = vpop.f32.mrb[0].mxu0
    %923 = vmatprep.mubr.f32.mxu0 0.0
    %924 = vmatmul.mubr.f32.gmra.mrb[0].mxu0 %v112
    %v925 = vpop.f32.mrb[0].mxu0
    %v926 = vadd.f32 0.0, %v925
    %v927 = vpop.f32.mrb[0].mxu0
    %928 = vmatprep.mubr.f32.mxu0 0.0
    %929 = vmatmul.mubr.f32.gmra.mrb[0].mxu0 %v113
    %v930 = vpop.f32.mrb[0].mxu0
    %v931 = vadd.f32 0.0, %v930
    %v932 = vpop.f32.mrb[0].mxu0
    %933 = vdwg.mxu0
    %v934 = vld [vmem:[#allocation10] sm:$0xff]
    %v935 = vld [vmem:[#allocation10 + $0x8] sm:$0xff]
    %v936 = vld [vmem:[#allocation10 + $0x10] sm:$0xff]
    %v937 = vld [vmem:[#allocation10 + $0x18] sm:$0xff]
    %v938 = vld [vmem:[#allocation10 + $0x20] sm:$0xff]
    %v939 = vld [vmem:[#allocation10 + $0x28] sm:$0xff]
    %v940 = vld [vmem:[#allocation10 + $0x30] sm:$0xff]
    %v941 = vld [vmem:[#allocation10 + $0x38] sm:$0xff]
    %v942 = vld [vmem:[#allocation10 + $0x40] sm:$0xff]
    %v943 = vld [vmem:[#allocation10 + $0x48] sm:$0xff]
    %v944 = vld [vmem:[#allocation10 + $0x50] sm:$0xff]
    %v945 = vld [vmem:[#allocation10 + $0x58] sm:$0xff]
    %v946 = vld [vmem:[#allocation10 + $0x60] sm:$0xff]
    %v947 = vld [vmem:[#allocation10 + $0x68] sm:$0xff]
    %v948 = vld [vmem:[#allocation10 + $0x70] sm:$0xff]
    %v949 = vld [vmem:[#allocation10 + $0x78] sm:$0xff]
    %v951 = vlaneseq
    %v952 = vshrl.u32 %v951, 7
    %v953 = vsub.s32 0, %v952
    %v954 = vrot.slane %v788, %v953
    %956 = vmatprep.subr.mxu0 0.0
    %957 = vmatpush1.msra.mxu0 %v934
    %958 = vmatprep.subr.mxu0 0.0
    %959 = vmatpush1.msra.mxu0 %v935
    %960 = vmatprep.subr.mxu0 0.0
    %961 = vmatpush1.msra.mxu0 %v936
    %962 = vmatprep.subr.mxu0 0.0
    %963 = vmatpush1.msra.mxu0 %v937
    %964 = vmatprep.subr.mxu0 0.0
    %965 = vmatpush1.msra.mxu0 %v938
    %966 = vmatprep.subr.mxu0 0.0
    %967 = vmatpush1.msra.mxu0 %v939
    %968 = vmatprep.subr.mxu0 0.0
    %969 = vmatpush1.msra.mxu0 %v940
    %970 = vmatprep.subr.mxu0 0.0
    %971 = vmatpush1.msra.mxu0 %v941
    %972 = vmatprep.subr.mxu0 0.0
    %973 = vmatpush1.msra.mxu0 %v942
    %974 = vmatprep.subr.mxu0 0.0
    %975 = vmatpush1.msra.mxu0 %v943
    %976 = vmatprep.subr.mxu0 0.0
    %977 = vmatpush1.msra.mxu0 %v944
    %978 = vmatprep.subr.mxu0 0.0
    %979 = vmatpush1.msra.mxu0 %v945
    %980 = vmatprep.subr.mxu0 0.0
    %981 = vmatpush1.msra.mxu0 %v946
    %982 = vmatprep.subr.mxu0 0.0
    %983 = vmatpush1.msra.mxu0 %v947
    %984 = vmatprep.subr.mxu0 0.0
    %985 = vmatpush1.msra.mxu0 %v948
    %986 = vmatprep.subr.mxu0 0.0
    %987 = vmatpush1.msra.mxu0 %v949
    %988 = vmatprep.subr.mxu0 0.0
    %989 = vmatpush1.msra.mxu0 0.0
    %990 = vmatprep.subr.mxu0 0.0
    %991 = vmatpush1.msra.mxu0 0.0
    %992 = vmatprep.subr.mxu0 0.0
    %993 = vmatpush1.msra.mxu0 0.0
    %994 = vmatprep.subr.mxu0 0.0
    %995 = vmatpush1.msra.mxu0 0.0
    %996 = vmatprep.subr.mxu0 0.0
    %997 = vmatpush1.msra.mxu0 0.0
    %998 = vmatprep.subr.mxu0 0.0
    %999 = vmatpush1.msra.mxu0 0.0
    %1000 = vmatprep.subr.mxu0 0.0
    %1001 = vmatpush1.msra.mxu0 0.0
    %1002 = vmatprep.subr.mxu0 0.0
    %1003 = vmatpush1.msra.mxu0 0.0
    %1004 = vmatprep.subr.mxu0 0.0
    %1005 = vmatpush1.msra.mxu0 0.0
    %1006 = vmatprep.subr.mxu0 0.0
    %1007 = vmatpush1.msra.mxu0 0.0
    %1008 = vmatprep.subr.mxu0 0.0
    %1009 = vmatpush1.msra.mxu0 0.0
    %1010 = vmatprep.subr.mxu0 0.0
    %1011 = vmatpush1.msra.mxu0 0.0
    %1012 = vmatprep.subr.mxu0 0.0
    %1013 = vmatpush1.msra.mxu0 0.0
    %1014 = vmatprep.subr.mxu0 0.0
    %1015 = vmatpush1.msra.mxu0 0.0
    %1016 = vmatprep.subr.mxu0 0.0
    %1017 = vmatpush1.msra.mxu0 0.0
    %1018 = vmatprep.subr.mxu0 0.0
    %1019 = vmatpush1.msra.mxu0 0.0
    %1020 = vmatprep.mubr.f32.mxu0 0.0
    %1021 = vmatmul.mubr.f32.gmra.mrb[0].mxu0 %v856
    %v1022 = vpop.f32.mrb[0].mxu0
    %v1023 = vadd.f32 %v954, %v1022
    %v1024 = vpop.f32.mrb[0].mxu0
    %1025 = vmatprep.mubr.f32.mxu0 0.0
    %1026 = vmatmul.mubr.f32.gmra.mrb[0].mxu0 %v861
    %v1027 = vpop.f32.mrb[0].mxu0
    %v1028 = vadd.f32 %v954, %v1027
    %v1029 = vpop.f32.mrb[0].mxu0
    %1030 = vmatprep.mubr.f32.mxu0 0.0
    %1031 = vmatmul.mubr.f32.gmra.mrb[0].mxu0 %v866
    %v1032 = vpop.f32.mrb[0].mxu0
    %v1033 = vadd.f32 %v954, %v1032
    %v1034 = vpop.f32.mrb[0].mxu0
    %1035 = vmatprep.mubr.f32.mxu0 0.0
    %1036 = vmatmul.mubr.f32.gmra.mrb[0].mxu0 %v871
    %v1037 = vpop.f32.mrb[0].mxu0
    %v1038 = vadd.f32 %v954, %v1037
    %v1039 = vpop.f32.mrb[0].mxu0
    %1040 = vmatprep.mubr.f32.mxu0 0.0
    %1041 = vmatmul.mubr.f32.gmra.mrb[0].mxu0 %v876
    %v1042 = vpop.f32.mrb[0].mxu0
    %v1043 = vadd.f32 %v954, %v1042
    %v1044 = vpop.f32.mrb[0].mxu0
    %1045 = vmatprep.mubr.f32.mxu0 0.0
    %1046 = vmatmul.mubr.f32.gmra.mrb[0].mxu0 %v881
    %v1047 = vpop.f32.mrb[0].mxu0
    %v1048 = vadd.f32 %v954, %v1047
    %v1049 = vpop.f32.mrb[0].mxu0
    %1050 = vmatprep.mubr.f32.mxu0 0.0
    %1051 = vmatmul.mubr.f32.gmra.mrb[0].mxu0 %v886
    %v1052 = vpop.f32.mrb[0].mxu0
    %v1053 = vadd.f32 %v954, %v1052
    %v1054 = vpop.f32.mrb[0].mxu0
    %1055 = vmatprep.mubr.f32.mxu0 0.0
    %1056 = vmatmul.mubr.f32.gmra.mrb[0].mxu0 %v891
    %v1057 = vpop.f32.mrb[0].mxu0
    %v1058 = vadd.f32 %v954, %v1057
    %v1059 = vpop.f32.mrb[0].mxu0
    %1060 = vmatprep.mubr.f32.mxu0 0.0
    %1061 = vmatmul.mubr.f32.gmra.mrb[0].mxu0 %v896
    %v1062 = vpop.f32.mrb[0].mxu0
    %v1063 = vadd.f32 %v954, %v1062
    %v1064 = vpop.f32.mrb[0].mxu0
    %1065 = vmatprep.mubr.f32.mxu0 0.0
    %1066 = vmatmul.mubr.f32.gmra.mrb[0].mxu0 %v901
    %v1067 = vpop.f32.mrb[0].mxu0
    %v1068 = vadd.f32 %v954, %v1067
    %v1069 = vpop.f32.mrb[0].mxu0
    %1070 = vmatprep.mubr.f32.mxu0 0.0
    %1071 = vmatmul.mubr.f32.gmra.mrb[0].mxu0 %v906
    %v1072 = vpop.f32.mrb[0].mxu0
    %v1073 = vadd.f32 %v954, %v1072
    %v1074 = vpop.f32.mrb[0].mxu0
    %1075 = vmatprep.mubr.f32.mxu0 0.0
    %1076 = vmatmul.mubr.f32.gmra.mrb[0].mxu0 %v911
    %v1077 = vpop.f32.mrb[0].mxu0
    %v1078 = vadd.f32 %v954, %v1077
    %v1079 = vpop.f32.mrb[0].mxu0
    %1080 = vmatprep.mubr.f32.mxu0 0.0
    %1081 = vmatmul.mubr.f32.gmra.mrb[0].mxu0 %v916
    %v1082 = vpop.f32.mrb[0].mxu0
    %v1083 = vadd.f32 %v954, %v1082
    %v1084 = vpop.f32.mrb[0].mxu0
    %1085 = vmatprep.mubr.f32.mxu0 0.0
    %1086 = vmatmul.mubr.f32.gmra.mrb[0].mxu0 %v921
    %v1087 = vpop.f32.mrb[0].mxu0
    %v1088 = vadd.f32 %v954, %v1087
    %v1089 = vpop.f32.mrb[0].mxu0
    %1090 = vmatprep.mubr.f32.mxu0 0.0
    %1091 = vmatmul.mubr.f32.gmra.mrb[0].mxu0 %v926
    %v1092 = vpop.f32.mrb[0].mxu0
    %v1093 = vadd.f32 %v954, %v1092
    %v1094 = vpop.f32.mrb[0].mxu0
    %1095 = vmatprep.mubr.f32.mxu0 0.0
    %1096 = vmatmul.mubr.f32.gmra.mrb[0].mxu0 %v931
    %v1097 = vpop.f32.mrb[0].mxu0
    %v1098 = vadd.f32 %v954, %v1097
    %v1099 = vpop.f32.mrb[0].mxu0
    %1100 = vdwg.mxu0
    %1101 = vst [vmem:[#allocation11] sm:$0xff] %v1023
    %1102 = vst [vmem:[#allocation11 + $0x8] sm:$0xff] %v1028
    %1103 = vst [vmem:[#allocation11 + $0x10] sm:$0xff] %v1033
    %1104 = vst [vmem:[#allocation11 + $0x18] sm:$0xff] %v1038
    %1105 = vst [vmem:[#allocation11 + $0x20] sm:$0xff] %v1043
    %1106 = vst [vmem:[#allocation11 + $0x28] sm:$0xff] %v1048
    %1107 = vst [vmem:[#allocation11 + $0x30] sm:$0xff] %v1053
    %1108 = vst [vmem:[#allocation11 + $0x38] sm:$0xff] %v1058
    %1109 = vst [vmem:[#allocation11 + $0x40] sm:$0xff] %v1063
    %1110 = vst [vmem:[#allocation11 + $0x48] sm:$0xff] %v1068
    %1111 = vst [vmem:[#allocation11 + $0x50] sm:$0xff] %v1073
    %1112 = vst [vmem:[#allocation11 + $0x58] sm:$0xff] %v1078
    %1113 = vst [vmem:[#allocation11 + $0x60] sm:$0xff] %v1083
    %1114 = vst [vmem:[#allocation11 + $0x68] sm:$0xff] %v1088
    %1115 = vst [vmem:[#allocation11 + $0x70] sm:$0xff] %v1093
    %1116 = vst [vmem:[#allocation11 + $0x78] sm:$0xff] %v1098
    // Predicated region
    $region54: #{tpu_custom_call.1} parent=1 // pred_check
      _
    $region55: #{tpu_custom_call.1} parent=1 // pred_check_branch
      %1118 = sbr.rel (0) target = $region57
    $region56: #{tpu_custom_call.1} parent=1 // pred_region
      %s1120 = ssub.s32 2048, 2048
      %1121 = vsyncadd [#allocation4], %s1120
      %s1122 = sshll.u32 [#allocation11], 4
      %s1123 = int_to_ptr.vmem [resolvable:$true] %s1122
      %1128 = dma.vmem_to_hbm [thread:$0]  %s1123, 2048, %s8, [#allocation4], 128, 128, 8
    $region57: #{tpu_custom_call.1} parent=1 // pred_fallthru
      _
    // Predicated region
    $region58: #{tpu_custom_call.1} parent=1 // pred_check
      _
    $region59: #{tpu_custom_call.1} parent=1 // pred_check_branch
      %1130 = sbr.rel (0) target = $region61
    $region60: #{tpu_custom_call.1} parent=1 // pred_region
      %1131 = dma.done [#allocation4], 2048
    $region61: #{tpu_custom_call.1} parent=1 // pred_fallthru
      _
    %1132 = vsyncpa [#allocation3], 1
    %1133 = vsyncpa [#allocation6], 1
    %1134 = vsyncpa [#allocation9], 1
    %1135 = vsyncpa [#allocation4], 1

</llo_original>
